<compile_context>
chip_gen: v6e
topology: v6e:2x2x1
jax: 0.10.0
libtpu: 0.0.40
codegen_flags: <defaults>
</compile_context>

<pallas_src>
import jax
import jax.numpy as jnp
from jax.experimental import pallas as pl
from jax.experimental.pallas import tpu as pltpu


def _round_up(a: int, b: int) -> int:
    return ((a + b - 1) // b) * b


def _mlp_kernel(x_ref, w1_ref, b1_ref, w2_ref, b2_ref, o_ref):
    # Cast the streamed activation tile to the MXU operand dtype on the VPU.
    x = x_ref[...].astype(w1_ref.dtype)
    # hidden = sigmoid(x @ W1 + b1): bf16 MXU operands, f32 accumulation.
    z1 = jnp.dot(x, w1_ref[...], preferred_element_type=jnp.float32)
    z1 = z1 + b1_ref[...]                                   # (tm, H) + (1, H)
    # sigmoid(z) = 0.5 * tanh(0.5 * z) + 0.5  (single EUP op, f32 elementwise)
    h = 0.5 * jnp.tanh(0.5 * z1) + 0.5
    # out = h @ W2 + b2
    z2 = jnp.dot(h.astype(w2_ref.dtype), w2_ref[...],
                 preferred_element_type=jnp.float32)
    o_ref[...] = (z2 + b2_ref[...]).astype(o_ref.dtype)


def prepare_params(w1, b1, w2, b2, *, compute_dtype=jnp.bfloat16):
    """One-time parameter prep (hoisted out of the per-call hot path).

    w1: (n_features, hidden_dim), w2: (hidden_dim, output_dim) -- already
    transposed relative to torch.nn.Linear.weight.  Weights are cast to the
    MXU operand dtype; biases become (1, dim) f32 rows (added post-accum).
    """
    return (w1.astype(compute_dtype),
            jnp.asarray(b1, jnp.float32).reshape(1, -1),
            w2.astype(compute_dtype),
            jnp.asarray(b2, jnp.float32).reshape(1, -1))


def mlp_forward(x, w1, b1, w2, b2, *, tm=None):
    """Forward pass.  Params must come from prepare_params()."""
    n_features, hidden_dim = w1.shape
    output_dim = w2.shape[1]
    out_dtype = x.dtype

    # PyTorch's inputs.view(-1, n_features)
    x2d = x.reshape(-1, n_features)
    M = x2d.shape[0]

    # Row tile: multiple of 16 (bf16 sublane packing), large enough to fill
    # MXU rows and amortize the ~0.35us/step pipeline overhead, but capped so
    # moderate/large batches still give >= 2 grid steps (dual-TC sharding on
    # v7x via the "parallel" axis).
    if tm is None:
        tm = max(16, min(512, _round_up(-(-M // 2), 16)))
    tm = _round_up(tm, 16)

    grid = (pl.cdiv(M, tm),)

    def _isz(a):
        return jnp.dtype(a.dtype).itemsize

    cost = pl.CostEstimate(
        flops=2 * M * (n_features * hidden_dim + hidden_dim * output_dim),
        transcendentals=M * hidden_dim,
        bytes_accessed=(x2d.size * _isz(x2d)
                        + w1.size * _isz(w1) + w2.size * _isz(w2)
                        + b1.size * _isz(b1) + b2.size * _isz(b2)
                        + M * output_dim * jnp.dtype(out_dtype).itemsize),
    )

    return pl.pallas_call(
        _mlp_kernel,
        out_shape=jax.ShapeDtypeStruct((M, output_dim), out_dtype),
        grid_spec=pltpu.PrefetchScalarGridSpec(
            num_scalar_prefetch=0,
            grid=grid,
            in_specs=[
                # x tile streams; full last dim -> no lane padding needed.
                pl.BlockSpec((tm, n_features), lambda i: (i, 0)),
                # Weights / biases are grid-invariant -> VMEM resident.
                pl.BlockSpec((n_features, hidden_dim), lambda i: (0, 0)),
                pl.BlockSpec((1, hidden_dim), lambda i: (0, 0)),
                pl.BlockSpec((hidden_dim, output_dim), lambda i: (0, 0)),
                pl.BlockSpec((1, output_dim), lambda i: (0, 0)),
            ],
            # Output in the caller's dtype, full (small) last dim: no
            # 128-lane pad, no post-kernel slice copy.
            out_specs=pl.BlockSpec((tm, output_dim), lambda i: (i, 0)),
        ),
        compiler_params=pltpu.CompilerParams(
            dimension_semantics=("parallel",),
        ),
        cost_estimate=cost,
    )(x2d, w1, b1, w2, b2)


def init_params(key, n_features, hidden_dim, output_dim, dtype=jnp.float32):
    """Deterministic synthetic params (torch.nn.Linear-style init, stored
    transposed as [in, out] for the kernel)."""
    k1, k2, k3, k4 = jax.random.split(key, 4)
    lim1 = 1.0 / (n_features ** 0.5)
    lim2 = 1.0 / (hidden_dim ** 0.5)
    w1 = jax.random.uniform(k1, (n_features, hidden_dim), dtype, -lim1, lim1)
    b1 = jax.random.uniform(k2, (hidden_dim,), dtype, -lim1, lim1)
    w2 = jax.random.uniform(k3, (hidden_dim, output_dim), dtype, -lim2, lim2)
    b2 = jax.random.uniform(k4, (output_dim,), dtype, -lim2, lim2)
    return w1, b1, w2, b2


if __name__ == "__main__":
    n_features, hidden_dim, output_dim = 32, 64, 16
    key = jax.random.PRNGKey(0)
    kx, kp = jax.random.split(key)

    # input of shape (2, 4, 32) -> view(-1, 32) gives 8 rows of 32 features
    x = jax.random.normal(kx, (2, 4, n_features), dtype=jnp.float32)
    w1, b1, w2, b2 = init_params(kp, n_features, hidden_dim, output_dim)

    # One-time param prep (bf16 cast + bias reshape), outside the hot path.
    w1p, b1p, w2p, b2p = prepare_params(w1, b1, w2, b2)

    out = mlp_forward(x, w1p, b1p, w2p, b2p)
    out = jax.block_until_ready(out)

    # Plain-JAX f32 reference; kernel uses bf16 MXU operands -> matching tol.
    x2d = x.reshape(-1, n_features)
    ref = jax.nn.sigmoid(x2d @ w1 + b1) @ w2 + b2
    assert out.shape == (8, output_dim)
    assert jnp.allclose(out, ref, atol=2e-2, rtol=2e-2), (
        float(jnp.max(jnp.abs(out - ref))))

    print("KERNEL_OK")
</pallas_src>

<mosaic_0001>
module attributes {stable_mosaic.version = 11 : i64} {
  func.func @_mlp_kernel(%arg0: i32, %arg1: memref<16x32xf32, #tpu.memory_space<vmem>>, %arg2: memref<32x64xbf16, #tpu.memory_space<vmem>>, %arg3: memref<1x64xf32, #tpu.memory_space<vmem>>, %arg4: memref<64x16xbf16, #tpu.memory_space<vmem>>, %arg5: memref<1x16xf32, #tpu.memory_space<vmem>>, %arg6: memref<16x16xf32, #tpu.memory_space<vmem>>) attributes {dimension_semantics = [#tpu.dimension_semantics<parallel>], iteration_bounds = array<i64: 1>, scalar_prefetch = 0 : i64, scratch_operands = 0 : i64, tpu.core_type = #tpu.core_type<tc>, window_params = [{transform_indices = @transform_0, window_bounds = array<i64: 16, 32>}, {pipeline_mode = #tpu.pipeline_mode<synchronous>, transform_indices = @transform_1, window_bounds = array<i64: 32, 64>}, {pipeline_mode = #tpu.pipeline_mode<synchronous>, transform_indices = @transform_2, window_bounds = array<i64: 1, 64>}, {pipeline_mode = #tpu.pipeline_mode<synchronous>, transform_indices = @transform_3, window_bounds = array<i64: 64, 16>}, {pipeline_mode = #tpu.pipeline_mode<synchronous>, transform_indices = @transform_4, window_bounds = array<i64: 1, 16>}, {transform_indices = @transform_5, window_bounds = array<i64: 16, 16>}]} {
    %c0 = arith.constant 0 : index
    %c0_0 = arith.constant 0 : index
    %0 = vector.load %arg1[%c0, %c0_0] : memref<16x32xf32, #tpu.memory_space<vmem>>, vector<16x32xf32>
    %1 = arith.truncf %0 : vector<16x32xf32> to vector<16x32xbf16>
    %c0_1 = arith.constant 0 : index
    %c0_2 = arith.constant 0 : index
    %2 = vector.load %arg2[%c0_1, %c0_2] : memref<32x64xbf16, #tpu.memory_space<vmem>>, vector<32x64xbf16>
    %cst = arith.constant dense<0.000000e+00> : vector<16x64xf32>
    %3 = tpu.matmul %1, %2, %cst {dimension_numbers = #tpu.dot_dimension_numbers<[1], [0], [0], [1], [0, 0, 1, 1], [], []>} : vector<16x32xbf16>, vector<32x64xbf16>, vector<16x64xf32> -> vector<16x64xf32>
    %c0_3 = arith.constant 0 : index
    %c0_4 = arith.constant 0 : index
    %4 = vector.load %arg3[%c0_3, %c0_4] : memref<1x64xf32, #tpu.memory_space<vmem>>, vector<1x64xf32>
    %5 = vector.broadcast %4 : vector<1x64xf32> to vector<16x64xf32>
    %6 = arith.addf %3, %5 : vector<16x64xf32>
    %cst_5 = arith.constant 5.000000e-01 : f32
    %7 = vector.broadcast %cst_5 : f32 to vector<16x64xf32>
    %8 = arith.mulf %7, %6 : vector<16x64xf32>
    %9 = math.tanh %8 : vector<16x64xf32>
    %cst_6 = arith.constant 5.000000e-01 : f32
    %10 = vector.broadcast %cst_6 : f32 to vector<16x64xf32>
    %11 = arith.mulf %10, %9 : vector<16x64xf32>
    %cst_7 = arith.constant 5.000000e-01 : f32
    %12 = vector.broadcast %cst_7 : f32 to vector<16x64xf32>
    %13 = arith.addf %11, %12 : vector<16x64xf32>
    %14 = arith.truncf %13 : vector<16x64xf32> to vector<16x64xbf16>
    %c0_8 = arith.constant 0 : index
    %c0_9 = arith.constant 0 : index
    %15 = vector.load %arg4[%c0_8, %c0_9] : memref<64x16xbf16, #tpu.memory_space<vmem>>, vector<64x16xbf16>
    %cst_10 = arith.constant dense<0.000000e+00> : vector<16x16xf32>
    %16 = tpu.matmul %14, %15, %cst_10 {dimension_numbers = #tpu.dot_dimension_numbers<[1], [0], [0], [1], [0, 0, 1, 1], [], []>} : vector<16x64xbf16>, vector<64x16xbf16>, vector<16x16xf32> -> vector<16x16xf32>
    %c0_11 = arith.constant 0 : index
    %c0_12 = arith.constant 0 : index
    %17 = vector.load %arg5[%c0_11, %c0_12] : memref<1x16xf32, #tpu.memory_space<vmem>>, vector<1x16xf32>
    %18 = vector.broadcast %17 : vector<1x16xf32> to vector<16x16xf32>
    %19 = arith.addf %16, %18 : vector<16x16xf32>
    %c0_13 = arith.constant 0 : index
    %c0_14 = arith.constant 0 : index
    %20 = vector.load %arg6[%c0_13, %c0_14] : memref<16x16xf32, #tpu.memory_space<vmem>>, vector<16x16xf32>
    tpu.vector_store %arg6[%c0_13, %c0_14], %19 {strides = array<i32>} : memref<16x16xf32, #tpu.memory_space<vmem>>, vector<16x16xf32>,
    return
  }
  func.func @transform_0(%arg0: i32) -> (i32, i32) {
    %c0_i32 = arith.constant 0 : i32
    %c0_i32_0 = arith.constant 0 : i32
    return %arg0, %c0_i32 : i32, i32
  }
  func.func @transform_1(%arg0: i32) -> (i32, i32) {
    %c0_i32 = arith.constant 0 : i32
    %c0_i32_0 = arith.constant 0 : i32
    %c0_i32_1 = arith.constant 0 : i32
    return %c0_i32, %c0_i32_0 : i32, i32
  }
  func.func @transform_2(%arg0: i32) -> (i32, i32) {
    %c0_i32 = arith.constant 0 : i32
    %c0_i32_0 = arith.constant 0 : i32
    %c0_i32_1 = arith.constant 0 : i32
    return %c0_i32, %c0_i32_0 : i32, i32
  }
  func.func @transform_3(%arg0: i32) -> (i32, i32) {
    %c0_i32 = arith.constant 0 : i32
    %c0_i32_0 = arith.constant 0 : i32
    %c0_i32_1 = arith.constant 0 : i32
    return %c0_i32, %c0_i32_0 : i32, i32
  }
  func.func @transform_4(%arg0: i32) -> (i32, i32) {
    %c0_i32 = arith.constant 0 : i32
    %c0_i32_0 = arith.constant 0 : i32
    %c0_i32_1 = arith.constant 0 : i32
    return %c0_i32, %c0_i32_0 : i32, i32
  }
  func.func @transform_5(%arg0: i32) -> (i32, i32) {
    %c0_i32 = arith.constant 0 : i32
    %c0_i32_0 = arith.constant 0 : i32
    return %arg0, %c0_i32 : i32, i32
  }
}

</mosaic_0001>

<llo_original>
// kernel: tpu_custom_call.1
$region0: #{tpu_custom_call.1}
  #allocation0 [shape = 'u32[]', space=smem, size = 0x4, offset = 0x4, fixed_abs, tag = 'smem constant byte address 0x4 - core index']
  #allocation1 [shape = 'u32[144,128]{1,0:T(1,128)}', space=vmem, size = 0x12000, scoped, tag = 'internal scratch']
  %s0 = inlined_call_operand.vmem [shape: f32[8,32], index: 0, kind: input, shape index: {}]
  %s1 = inlined_call_operand.vmem [shape: bf16[32,64], index: 1, kind: input, shape index: {}]
  %s2 = inlined_call_operand.vmem [shape: f32[1,64], index: 2, kind: input, shape index: {}]
  %s3 = inlined_call_operand.vmem [shape: bf16[64,16], index: 3, kind: input, shape index: {}]
  %s4 = inlined_call_operand.vmem [shape: f32[1,16], index: 4, kind: input, shape index: {}]
  %s5 = inlined_call_operand.hbm [shape: f32[8,16], index: 5, kind: output, shape index: {}]
  %s6 = sld [smem:[#allocation0]]
  $region30: #{tpu_custom_call.1} parent=0
    _
  %s8 = ssub.s32 1, %s6
  %s9 = scalar_select 0, %s8, %s6
  $region1: #{tpu_custom_call.1} parent=0
    #allocation2 [shape = 'u8[8192]{0}', space=vmem, size = 0x2000, scoped, tag = 'output window, operand 0, single buffered']
    #allocation3 [shape = 's32[1]{0}', space=sflag, size = 0x4, scoped, tag = 'scoped memory for tpu_custom_call.1']
    %10 = vsyncpa [#allocation3], 0
    // Predicated region
    $region2: #{tpu_custom_call.1} parent=1 // pred_check
      _
    $region3: #{tpu_custom_call.1} parent=1 // pred_check_branch
      %12 = sbr.rel (0) target = $region5
    $region4: #{tpu_custom_call.1} parent=1 // pred_region
      _
    $region5: #{tpu_custom_call.1} parent=1 // pred_fallthru
      _
    // Predicated region
    $region6: #{tpu_custom_call.1} parent=1 // pred_check
      _
    $region7: #{tpu_custom_call.1} parent=1 // pred_check_branch
      %14 = sbr.rel (0) target = $region9
    $region8: #{tpu_custom_call.1} parent=1 // pred_region
      _
    $region9: #{tpu_custom_call.1} parent=1 // pred_fallthru
      _
    // Predicated region
    $region10: #{tpu_custom_call.1} parent=1 // pred_check
      _
    $region11: #{tpu_custom_call.1} parent=1 // pred_check_branch
      %16 = sbr.rel (0) target = $region13
    $region12: #{tpu_custom_call.1} parent=1 // pred_region
      _
    $region13: #{tpu_custom_call.1} parent=1 // pred_fallthru
      _
    // Predicated region
    $region14: #{tpu_custom_call.1} parent=1 // pred_check
      _
    $region15: #{tpu_custom_call.1} parent=1 // pred_check_branch
      %18 = sbr.rel (0) target = $region17
    $region16: #{tpu_custom_call.1} parent=1 // pred_region
      _
    $region17: #{tpu_custom_call.1} parent=1 // pred_fallthru
      _
    // Predicated region
    $region18: #{tpu_custom_call.1} parent=1 // pred_check
      _
    $region19: #{tpu_custom_call.1} parent=1 // pred_check_branch
      %20 = sbr.rel (0) target = $region21
    $region20: #{tpu_custom_call.1} parent=1 // pred_region
      _
    $region21: #{tpu_custom_call.1} parent=1 // pred_fallthru
      _
    %v22 = vld [vmem:[%s0] sm:$0xff]
    %v23 = vld [vmem:[%s0 + $0x8] sm:$0xff]
    %v24 = vpack.c.bf16 %v23, %v22
    %v25 = vld [vmem:[%s1] sm:$0xf]
    %v26 = vld [vmem:[%s1 + $0x4] sm:$0xf]
    %v27 = vld [vmem:[%s1 + $0x8] sm:$0xf]
    %v28 = vld [vmem:[%s1 + $0xc] sm:$0xf]
    %v29 = vld [vmem:[%s2] sm:$0x1]
    %v31 = vlaneseq
    %v32 = vshrl.u32 %v31, 7
    %v33 = vsub.s32 0, %v32
    %v34 = vrot.slane %v29, %v33
    %v40 = vunpack.c.l.b16 %v25
    %v41 = vunpack.c.l.b16 %v26
    %v42 = vunpack.c.l.b16 %v27
    %v43 = vunpack.c.l.b16 %v28
    %v44 = vpack.c.b16 %v41, %v40
    %v45 = vpack.c.b16 %v43, %v42
    %vm48 = vcmask 261120
    %v50 = vsel %vm48, %v24, 0
    %52 = vmatprep.subr.bf16.mxu0 0
    %53 = vmatpush1.bf16.msra.mxu0 0
    %54 = vmatprep.subr.bf16.mxu0 0
    %55 = vmatpush1.bf16.msra.mxu0 0
    %56 = vmatprep.subr.bf16.mxu0 0
    %57 = vmatpush1.bf16.msra.mxu0 0
    %58 = vmatprep.subr.bf16.mxu0 0
    %59 = vmatpush1.bf16.msra.mxu0 0
    %60 = vmatprep.subr.bf16.mxu0 0
    %61 = vmatpush1.bf16.msra.mxu0 0
    %62 = vmatprep.subr.bf16.mxu0 0
    %63 = vmatpush1.bf16.msra.mxu0 0
    %64 = vmatprep.subr.bf16.mxu0 0
    %65 = vmatpush1.bf16.msra.mxu0 %v45
    %66 = vmatprep.subr.bf16.mxu0 0
    %67 = vmatpush1.bf16.msra.mxu0 %v44
    %68 = vmatprep.subr.bf16.mxu0 0
    %69 = vmatpush2.bf16.msra.mxu0 0
    %70 = vmatprep.subr.bf16.mxu0 0
    %71 = vmatpush2.bf16.msra.mxu0 0
    %72 = vmatprep.subr.bf16.mxu0 0
    %73 = vmatpush2.bf16.msra.mxu0 0
    %74 = vmatprep.subr.bf16.mxu0 0
    %75 = vmatpush2.bf16.msra.mxu0 0
    %76 = vmatprep.subr.bf16.mxu0 0
    %77 = vmatpush2.bf16.msra.mxu0 0
    %78 = vmatprep.subr.bf16.mxu0 0
    %79 = vmatpush2.bf16.msra.mxu0 0
    %80 = vmatprep.subr.bf16.mxu0 0
    %81 = vmatpush2.bf16.msra.mxu0 0
    %82 = vmatprep.subr.bf16.mxu0 0
    %83 = vmatpush2.bf16.msra.mxu0 0
    %84 = vmatprep.mubr.bf16.mxu0 0
    %85 = vmatmul.mubr.bf16.gmra.mxu0 %v50
    %v86 = vpop.f32.mrf.mxu0
    %v87 = vadd.f32 %v34, %v86
    %v88 = vpop.f32.mrf.mxu0
    %v89 = vpop.f32.mrf.mxu0
    %v90 = vadd.f32 %v34, %v89
    %v91 = vpop.f32.mrf.mxu0
    %92 = vdwg.mxu0
    %v93 = vmul.f32 %v87, 0.5
    %v94 = vmul.f32 %v90, 0.5
    %v95 = vtanh.pop %v93
    %v96 = vtanh.pop %v94
    %v97 = vmul.f32 %v95, 0.5
    %v98 = vmul.f32 %v96, 0.5
    %v99 = vadd.f32 %v97, 0.5
    %v100 = vadd.f32 %v98, 0.5
    %v101 = vpack.c.bf16 %v100, %v99
    %v102 = vld [vmem:[%s3] sm:$0xf]
    %v103 = vld [vmem:[%s3 + $0x4] sm:$0xf]
    %v104 = vld [vmem:[%s3 + $0x8] sm:$0xf]
    %v105 = vld [vmem:[%s3 + $0xc] sm:$0xf]
    %v106 = vld [vmem:[%s3 + $0x10] sm:$0xf]
    %v107 = vld [vmem:[%s3 + $0x14] sm:$0xf]
    %v108 = vld [vmem:[%s3 + $0x18] sm:$0xf]
    %v109 = vld [vmem:[%s3 + $0x1c] sm:$0xf]
    %v110 = vld [vmem:[%s4] sm:$0x1]
    %v112 = vlaneseq
    %v113 = vshrl.u32 %v112, 7
    %v114 = vsub.s32 0, %v113
    %v115 = vrot.slane %v110, %v114
    %v125 = vunpack.c.l.b16 %v102
    %v126 = vunpack.c.l.b16 %v103
    %v127 = vunpack.c.l.b16 %v104
    %v128 = vunpack.c.l.b16 %v105
    %v129 = vunpack.c.l.b16 %v106
    %v130 = vunpack.c.l.b16 %v107
    %v131 = vunpack.c.l.b16 %v108
    %v132 = vunpack.c.l.b16 %v109
    %v133 = vpack.c.b16 %v126, %v125
    %v134 = vpack.c.b16 %v128, %v127
    %v135 = vpack.c.b16 %v130, %v129
    %v136 = vpack.c.b16 %v132, %v131
    %vm141 = vcmask 523264
    %v143 = vsel %vm141, %v101, 0
    %145 = vmatprep.subr.bf16.mxu0 0
    %146 = vmatpush1.bf16.msra.mxu0 0
    %147 = vmatprep.subr.bf16.mxu0 0
    %148 = vmatpush1.bf16.msra.mxu0 0
    %149 = vmatprep.subr.bf16.mxu0 0
    %150 = vmatpush1.bf16.msra.mxu0 0
    %151 = vmatprep.subr.bf16.mxu0 0
    %152 = vmatpush1.bf16.msra.mxu0 0
    %153 = vmatprep.subr.bf16.mxu0 0
    %154 = vmatpush1.bf16.msra.mxu0 %v136
    %155 = vmatprep.subr.bf16.mxu0 0
    %156 = vmatpush1.bf16.msra.mxu0 %v135
    %157 = vmatprep.subr.bf16.mxu0 0
    %158 = vmatpush1.bf16.msra.mxu0 %v134
    %159 = vmatprep.subr.bf16.mxu0 0
    %160 = vmatpush1.bf16.msra.mxu0 %v133
    %161 = vmatprep.subr.bf16.mxu0 0
    %162 = vmatpush2.bf16.msra.mxu0 0
    %163 = vmatprep.subr.bf16.mxu0 0
    %164 = vmatpush2.bf16.msra.mxu0 0
    %165 = vmatprep.subr.bf16.mxu0 0
    %166 = vmatpush2.bf16.msra.mxu0 0
    %167 = vmatprep.subr.bf16.mxu0 0
    %168 = vmatpush2.bf16.msra.mxu0 0
    %169 = vmatprep.subr.bf16.mxu0 0
    %170 = vmatpush2.bf16.msra.mxu0 0
    %171 = vmatprep.subr.bf16.mxu0 0
    %172 = vmatpush2.bf16.msra.mxu0 0
    %173 = vmatprep.subr.bf16.mxu0 0
    %174 = vmatpush2.bf16.msra.mxu0 0
    %175 = vmatprep.subr.bf16.mxu0 0
    %176 = vmatpush2.bf16.msra.mxu0 0
    %177 = vmatprep.mubr.bf16.mxu0 0
    %178 = vmatmul.mubr.bf16.gmra.mxu0 %v143
    %v179 = vpop.f32.mrf.mxu0
    %v180 = vadd.f32 %v115, %v179
    %v181 = vpop.f32.mrf.mxu0
    %v182 = vpop.f32.mrf.mxu0
    %v183 = vadd.f32 %v115, %v182
    %v184 = vpop.f32.mrf.mxu0
    %185 = vdwg.mxu0
    %vm186 = vcmask 130048
    %187 = vst.msk [vmem:[#allocation2] sm:$0xff] %vm186, %v180
    %188 = vst.msk [vmem:[#allocation2 + $0x8] sm:$0xff] %vm186, %v183
    // Predicated region
    $region22: #{tpu_custom_call.1} parent=1 // pred_check
      _
    $region23: #{tpu_custom_call.1} parent=1 // pred_check_branch
      %190 = sbr.rel (0) target = $region25
    $region24: #{tpu_custom_call.1} parent=1 // pred_region
      %s192 = ssub.s32 256, 128
      %193 = vsyncadd [#allocation3], %s192
      %s194 = sshll.u32 [#allocation2], 4
      %s195 = int_to_ptr.vmem [resolvable:$true] %s194
      %200 = dma.vmem_to_hbm [thread:$0]  %s195, 128, %s5, [#allocation3], 128, 128, 8
    $region25: #{tpu_custom_call.1} parent=1 // pred_fallthru
      _
    // Predicated region
    $region26: #{tpu_custom_call.1} parent=1 // pred_check
      _
    $region27: #{tpu_custom_call.1} parent=1 // pred_check_branch
      %202 = sbr.rel (0) target = $region29
    $region28: #{tpu_custom_call.1} parent=1 // pred_region
      %203 = dma.done [#allocation3], 256
    $region29: #{tpu_custom_call.1} parent=1 // pred_fallthru
      _
    %204 = vsyncpa [#allocation3], 1

</llo_original>
